<compile_context>
chip_gen: v6e
topology: v6e:2x2x1
jax: 0.10.0
libtpu: 0.0.40
codegen_flags: <defaults>
</compile_context>

<pallas_src>
import jax
import jax.numpy as jnp
from jax.experimental import pallas as pl
from jax.experimental.pallas import tpu as pltpu


INPUT_DIM = 200
LATENT_DIM = 32
HIDDEN_DIM = 128
NUM_CP = 10

DEC_VALID = 4 * NUM_CP + 1       # 41 real decoder outputs (20 + 10 + 11)
DEC_PAD = 128                    # lane-dense fused decoder width


def _round_up(n, m):
    return ((n + m - 1) // m) * m


# ---------------------------------------------------------------------------
# Kernel: encoder MLP + fused decoder head, one batch tile per grid step.
# ---------------------------------------------------------------------------
def _sf2nurbs_kernel(x_ref, w1_ref, b1_ref, w2_ref, b2_ref, wdec_ref, bdec_ref,
                     out_ref):
    x = x_ref[...]                                   # (TB, 200) f32

    # encoder: Linear(200->128) -> ReLU -> Linear(128->32)
    h = jnp.dot(x, w1_ref[...], preferred_element_type=jnp.float32) + b1_ref[...]
    h = jnp.maximum(h, 0.0)
    latent = jnp.dot(h, w2_ref[...], preferred_element_type=jnp.float32) + b2_ref[...]

    # fused decoder heads (cp | weights | knots | zero-pad) -> lane-dense store
    out = jnp.dot(latent, wdec_ref[...], preferred_element_type=jnp.float32) + bdec_ref[...]
    out_ref[...] = out.astype(out_ref.dtype)


# ---------------------------------------------------------------------------
# Wrapper
# ---------------------------------------------------------------------------
def superformula_to_nurbs(x, prepped_params, *, block_b=256):
    """x: (B, INPUT_DIM) f32.  Returns (control_points (B,10,2), weights (B,10),
    knots (B,11)) exactly matching the PyTorch module's forward."""
    B = x.shape[0]
    w1, b1, w2, b2, wdec, bdec = prepped_params

    # batch tiling: tile must be a multiple of 8 sublanes and divide padded B
    tb = min(block_b, _round_up(B, 8))
    b_pad = _round_up(B, tb)
    x_pad = x if b_pad == B else jnp.pad(x, ((0, b_pad - B), (0, 0)))
    grid = (b_pad // tb,)

    flops = 2 * b_pad * (INPUT_DIM * HIDDEN_DIM
                         + HIDDEN_DIM * LATENT_DIM
                         + LATENT_DIM * DEC_PAD)
    bytes_accessed = 4 * (x_pad.size
                          + w1.size + w2.size + wdec.size
                          + b1.size + b2.size + bdec.size
                          + b_pad * DEC_PAD)

    out = pl.pallas_call(
        _sf2nurbs_kernel,
        out_shape=jax.ShapeDtypeStruct((b_pad, DEC_PAD), jnp.float32),
        grid=grid,
        in_specs=[
            pl.BlockSpec((tb, INPUT_DIM), lambda i: (i, 0)),    # x tile
            pl.BlockSpec(w1.shape, lambda i: (0, 0)),           # weights stay
            pl.BlockSpec(b1.shape, lambda i: (0, 0)),           # VMEM-resident
            pl.BlockSpec(w2.shape, lambda i: (0, 0)),
            pl.BlockSpec(b2.shape, lambda i: (0, 0)),
            pl.BlockSpec(wdec.shape, lambda i: (0, 0)),
            pl.BlockSpec(bdec.shape, lambda i: (0, 0)),
        ],
        out_specs=pl.BlockSpec((tb, DEC_PAD), lambda i: (i, 0)),
        compiler_params=pltpu.CompilerParams(
            dimension_semantics=("parallel",)),
        cost_estimate=pl.CostEstimate(
            flops=flops, transcendentals=0, bytes_accessed=bytes_accessed),
    )(x_pad, w1, b1, w2, b2, wdec, bdec)

    out = out[:B, :DEC_VALID]
    control_points = out[:, : 2 * NUM_CP].reshape(-1, NUM_CP, 2)   # .view(-1,10,2)
    weights = out[:, 2 * NUM_CP: 3 * NUM_CP]
    knots = out[:, 3 * NUM_CP: 4 * NUM_CP + 1]
    return control_points, weights, knots


# ---------------------------------------------------------------------------
# Parameter construction (PyTorch-Linear-like init) + kernel-layout prep
# ---------------------------------------------------------------------------
def init_params(key):
    """Synthetic params matching the PyTorch module; weights stored transposed
    as (in_features, out_features)."""
    def linear(k, fan_in, fan_out):
        kw, kb = jax.random.split(k)
        bound = 1.0 / jnp.sqrt(fan_in)
        w = jax.random.uniform(kw, (fan_in, fan_out), jnp.float32, -bound, bound)
        b = jax.random.uniform(kb, (1, fan_out), jnp.float32, -bound, bound)
        return w, b

    k1, k2, k3, k4, k5 = jax.random.split(key, 5)
    w1, b1 = linear(k1, INPUT_DIM, HIDDEN_DIM)       # encoder[0]
    w2, b2 = linear(k2, HIDDEN_DIM, LATENT_DIM)      # encoder[2]
    wcp, bcp = linear(k3, LATENT_DIM, NUM_CP * 2)    # decoder_control_points
    wwt, bwt = linear(k4, LATENT_DIM, NUM_CP)        # decoder_weights
    wkn, bkn = linear(k5, LATENT_DIM, NUM_CP + 1)    # decoder_knots
    return (w1, b1, w2, b2, wcp, bcp, wwt, bwt, wkn, bkn)


def prep_params(raw):
    """Fuse the three decoder heads and pad them to a lane-dense 128 width."""
    (w1, b1, w2, b2, wcp, bcp, wwt, bwt, wkn, bkn) = raw

    # fuse the heads: (32, 41) weight / (1, 41) bias, zero-pad to 128 lanes
    wdec = jnp.concatenate([wcp, wwt, wkn], axis=1)
    bdec = jnp.concatenate([bcp, bwt, bkn], axis=1)
    wdec = jnp.pad(wdec, ((0, 0), (0, DEC_PAD - DEC_VALID)))
    bdec = jnp.pad(bdec, ((0, 0), (0, DEC_PAD - DEC_VALID)))

    return (w1, b1, w2, b2, wdec, bdec)


# ---------------------------------------------------------------------------
# Pure-JAX reference (identical math to the PyTorch module)
# ---------------------------------------------------------------------------
def _reference(x, prepped):
    w1, b1, w2, b2, wdec, bdec = prepped
    h = jnp.maximum(x @ w1 + b1, 0.0)
    latent = h @ w2 + b2
    out = latent @ wdec + bdec
    out = out[:, :DEC_VALID]
    cp = out[:, : 2 * NUM_CP].reshape(-1, NUM_CP, 2)
    wt = out[:, 2 * NUM_CP: 3 * NUM_CP]
    kn = out[:, 3 * NUM_CP: 4 * NUM_CP + 1]
    return cp, wt, kn


if __name__ == "__main__":
    key = jax.random.PRNGKey(0)
    kx, kx2, kp = jax.random.split(key, 3)

    params = prep_params(init_params(kp))

    # case 1: small, sublane-aligned batch
    B = 8
    x = jax.random.normal(kx, (B, INPUT_DIM), jnp.float32)
    cp, wt, kn = jax.block_until_ready(superformula_to_nurbs(x, params))
    cp_r, wt_r, kn_r = _reference(x, params)
    assert cp.shape == (B, NUM_CP, 2) and wt.shape == (B, NUM_CP) and kn.shape == (B, NUM_CP + 1)
    assert jnp.allclose(cp, cp_r, atol=1e-4, rtol=1e-4)
    assert jnp.allclose(wt, wt_r, atol=1e-4, rtol=1e-4)
    assert jnp.allclose(kn, kn_r, atol=1e-4, rtol=1e-4)

    # case 2: batch that exercises the padding path
    B2 = 5
    x2 = jax.random.normal(kx2, (B2, INPUT_DIM), jnp.float32)
    cp2, wt2, kn2 = jax.block_until_ready(superformula_to_nurbs(x2, params))
    cp2_r, wt2_r, kn2_r = _reference(x2, params)
    assert cp2.shape == (B2, NUM_CP, 2) and wt2.shape == (B2, NUM_CP) and kn2.shape == (B2, NUM_CP + 1)
    assert jnp.allclose(cp2, cp2_r, atol=1e-4, rtol=1e-4)
    assert jnp.allclose(wt2, wt2_r, atol=1e-4, rtol=1e-4)
    assert jnp.allclose(kn2, kn2_r, atol=1e-4, rtol=1e-4)

    print("KERNEL_OK")
</pallas_src>

<mosaic_0001>
module attributes {stable_mosaic.version = 11 : i64} {
  func.func @_sf2nurbs_kernel(%arg0: i32, %arg1: memref<8x200xf32, #tpu.memory_space<vmem>>, %arg2: memref<200x128xf32, #tpu.memory_space<vmem>>, %arg3: memref<1x128xf32, #tpu.memory_space<vmem>>, %arg4: memref<128x32xf32, #tpu.memory_space<vmem>>, %arg5: memref<1x32xf32, #tpu.memory_space<vmem>>, %arg6: memref<32x128xf32, #tpu.memory_space<vmem>>, %arg7: memref<1x128xf32, #tpu.memory_space<vmem>>, %arg8: memref<8x128xf32, #tpu.memory_space<vmem>>) attributes {dimension_semantics = [#tpu.dimension_semantics<parallel>], iteration_bounds = array<i64: 1>, scalar_prefetch = 0 : i64, scratch_operands = 0 : i64, tpu.core_type = #tpu.core_type<tc>, window_params = [{transform_indices = @transform_0, window_bounds = array<i64: 8, 200>}, {pipeline_mode = #tpu.pipeline_mode<synchronous>, transform_indices = @transform_1, window_bounds = array<i64: 200, 128>}, {pipeline_mode = #tpu.pipeline_mode<synchronous>, transform_indices = @transform_2, window_bounds = array<i64: 1, 128>}, {pipeline_mode = #tpu.pipeline_mode<synchronous>, transform_indices = @transform_3, window_bounds = array<i64: 128, 32>}, {pipeline_mode = #tpu.pipeline_mode<synchronous>, transform_indices = @transform_4, window_bounds = array<i64: 1, 32>}, {pipeline_mode = #tpu.pipeline_mode<synchronous>, transform_indices = @transform_5, window_bounds = array<i64: 32, 128>}, {pipeline_mode = #tpu.pipeline_mode<synchronous>, transform_indices = @transform_6, window_bounds = array<i64: 1, 128>}, {transform_indices = @transform_7, window_bounds = array<i64: 8, 128>}]} {
    %c0 = arith.constant 0 : index
    %c0_0 = arith.constant 0 : index
    %0 = vector.load %arg1[%c0, %c0_0] : memref<8x200xf32, #tpu.memory_space<vmem>>, vector<8x200xf32>
    %c0_1 = arith.constant 0 : index
    %c0_2 = arith.constant 0 : index
    %1 = vector.load %arg2[%c0_1, %c0_2] : memref<200x128xf32, #tpu.memory_space<vmem>>, vector<200x128xf32>
    %cst = arith.constant dense<0.000000e+00> : vector<8x128xf32>
    %2 = tpu.matmul %0, %1, %cst {dimension_numbers = #tpu.dot_dimension_numbers<[1], [0], [0], [1], [0, 0, 1, 1], [], []>} : vector<8x200xf32>, vector<200x128xf32>, vector<8x128xf32> -> vector<8x128xf32>
    %c0_3 = arith.constant 0 : index
    %c0_4 = arith.constant 0 : index
    %3 = vector.load %arg3[%c0_3, %c0_4] : memref<1x128xf32, #tpu.memory_space<vmem>>, vector<1x128xf32>
    %4 = vector.broadcast %3 : vector<1x128xf32> to vector<8x128xf32>
    %5 = arith.addf %2, %4 : vector<8x128xf32>
    %cst_5 = arith.constant 0.000000e+00 : f32
    %6 = vector.broadcast %cst_5 : f32 to vector<8x128xf32>
    %7 = arith.maximumf %5, %6 : vector<8x128xf32>
    %c0_6 = arith.constant 0 : index
    %c0_7 = arith.constant 0 : index
    %8 = vector.load %arg4[%c0_6, %c0_7] : memref<128x32xf32, #tpu.memory_space<vmem>>, vector<128x32xf32>
    %cst_8 = arith.constant dense<0.000000e+00> : vector<8x32xf32>
    %9 = tpu.matmul %7, %8, %cst_8 {dimension_numbers = #tpu.dot_dimension_numbers<[1], [0], [0], [1], [0, 0, 1, 1], [], []>} : vector<8x128xf32>, vector<128x32xf32>, vector<8x32xf32> -> vector<8x32xf32>
    %c0_9 = arith.constant 0 : index
    %c0_10 = arith.constant 0 : index
    %10 = vector.load %arg5[%c0_9, %c0_10] : memref<1x32xf32, #tpu.memory_space<vmem>>, vector<1x32xf32>
    %11 = vector.broadcast %10 : vector<1x32xf32> to vector<8x32xf32>
    %12 = arith.addf %9, %11 : vector<8x32xf32>
    %c0_11 = arith.constant 0 : index
    %c0_12 = arith.constant 0 : index
    %13 = vector.load %arg6[%c0_11, %c0_12] : memref<32x128xf32, #tpu.memory_space<vmem>>, vector<32x128xf32>
    %cst_13 = arith.constant dense<0.000000e+00> : vector<8x128xf32>
    %14 = tpu.matmul %12, %13, %cst_13 {dimension_numbers = #tpu.dot_dimension_numbers<[1], [0], [0], [1], [0, 0, 1, 1], [], []>} : vector<8x32xf32>, vector<32x128xf32>, vector<8x128xf32> -> vector<8x128xf32>
    %c0_14 = arith.constant 0 : index
    %c0_15 = arith.constant 0 : index
    %15 = vector.load %arg7[%c0_14, %c0_15] : memref<1x128xf32, #tpu.memory_space<vmem>>, vector<1x128xf32>
    %16 = vector.broadcast %15 : vector<1x128xf32> to vector<8x128xf32>
    %17 = arith.addf %14, %16 : vector<8x128xf32>
    %c0_16 = arith.constant 0 : index
    %c0_17 = arith.constant 0 : index
    %18 = vector.load %arg8[%c0_16, %c0_17] : memref<8x128xf32, #tpu.memory_space<vmem>>, vector<8x128xf32>
    tpu.vector_store %arg8[%c0_16, %c0_17], %17 {strides = array<i32>} : memref<8x128xf32, #tpu.memory_space<vmem>>, vector<8x128xf32>,
    return
  }
  func.func @transform_0(%arg0: i32) -> (i32, i32) {
    %c0_i32 = arith.constant 0 : i32
    %c0_i32_0 = arith.constant 0 : i32
    return %arg0, %c0_i32 : i32, i32
  }
  func.func @transform_1(%arg0: i32) -> (i32, i32) {
    %c0_i32 = arith.constant 0 : i32
    %c0_i32_0 = arith.constant 0 : i32
    %c0_i32_1 = arith.constant 0 : i32
    return %c0_i32, %c0_i32_0 : i32, i32
  }
  func.func @transform_2(%arg0: i32) -> (i32, i32) {
    %c0_i32 = arith.constant 0 : i32
    %c0_i32_0 = arith.constant 0 : i32
    %c0_i32_1 = arith.constant 0 : i32
    return %c0_i32, %c0_i32_0 : i32, i32
  }
  func.func @transform_3(%arg0: i32) -> (i32, i32) {
    %c0_i32 = arith.constant 0 : i32
    %c0_i32_0 = arith.constant 0 : i32
    %c0_i32_1 = arith.constant 0 : i32
    return %c0_i32, %c0_i32_0 : i32, i32
  }
  func.func @transform_4(%arg0: i32) -> (i32, i32) {
    %c0_i32 = arith.constant 0 : i32
    %c0_i32_0 = arith.constant 0 : i32
    %c0_i32_1 = arith.constant 0 : i32
    return %c0_i32, %c0_i32_0 : i32, i32
  }
  func.func @transform_5(%arg0: i32) -> (i32, i32) {
    %c0_i32 = arith.constant 0 : i32
    %c0_i32_0 = arith.constant 0 : i32
    %c0_i32_1 = arith.constant 0 : i32
    return %c0_i32, %c0_i32_0 : i32, i32
  }
  func.func @transform_6(%arg0: i32) -> (i32, i32) {
    %c0_i32 = arith.constant 0 : i32
    %c0_i32_0 = arith.constant 0 : i32
    %c0_i32_1 = arith.constant 0 : i32
    return %c0_i32, %c0_i32_0 : i32, i32
  }
  func.func @transform_7(%arg0: i32) -> (i32, i32) {
    %c0_i32 = arith.constant 0 : i32
    %c0_i32_0 = arith.constant 0 : i32
    return %arg0, %c0_i32 : i32, i32
  }
}

</mosaic_0001>

<llo_original>
// kernel: tpu_custom_call.1
$region0: #{tpu_custom_call.1}
  #allocation0 [shape = 'u32[]', space=smem, size = 0x4, offset = 0x4, fixed_abs, tag = 'smem constant byte address 0x4 - core index']
  #allocation1 [shape = 'u32[144,128]{1,0:T(1,128)}', space=vmem, size = 0x12000, scoped, tag = 'internal scratch']
  %s0 = inlined_call_operand.vmem [shape: f32[8,200], index: 0, kind: input, shape index: {}]
  %s1 = inlined_call_operand.hbm [shape: f32[200,128], index: 1, kind: input, shape index: {}]
  %s2 = inlined_call_operand.vmem [shape: f32[1,128], index: 2, kind: input, shape index: {}]
  %s3 = inlined_call_operand.vmem [shape: f32[128,32], index: 3, kind: input, shape index: {}]
  %s4 = inlined_call_operand.vmem [shape: f32[1,32], index: 4, kind: input, shape index: {}]
  %s5 = inlined_call_operand.vmem [shape: f32[32,128], index: 5, kind: input, shape index: {}]
  %s6 = inlined_call_operand.vmem [shape: f32[1,128], index: 6, kind: input, shape index: {}]
  %s7 = inlined_call_operand.hbm [shape: f32[8,128], index: 7, kind: output, shape index: {}]
  %s8 = sld [smem:[#allocation0]]
  $region42: #{tpu_custom_call.1} parent=0
    _
  %s10 = ssub.s32 1, %s8
  %s11 = scalar_select 0, %s10, %s8
  $region1: #{tpu_custom_call.1} parent=0
    #allocation2 [shape = 'u8[102400]{0}', space=vmem, size = 0x19000, scoped, tag = 'input window, operand 1, single buffered']
    #allocation3 [shape = 's32[1]{0}', space=sflag, size = 0x4, scoped, tag = 'scoped memory for tpu_custom_call.1']
    #allocation4 [shape = 's32[1]{0}', space=sflag, size = 0x4, scoped, tag = 'scoped memory for tpu_custom_call.1']
    #allocation5 [shape = 'u8[4096]{0}', space=vmem, size = 0x1000, scoped, tag = 'output window, operand 0, single buffered']
    %12 = vsyncpa [#allocation3], 0
    %13 = vsyncpa [#allocation4], 0
    // Predicated region
    $region2: #{tpu_custom_call.1} parent=1 // pred_check
      _
    $region3: #{tpu_custom_call.1} parent=1 // pred_check_branch
      %15 = sbr.rel (0) target = $region5
    $region4: #{tpu_custom_call.1} parent=1 // pred_region
      _
    $region5: #{tpu_custom_call.1} parent=1 // pred_fallthru
      _
    // Predicated region
    $region6: #{tpu_custom_call.1} parent=1 // pred_check
      _
    $region7: #{tpu_custom_call.1} parent=1 // pred_check_branch
      %17 = sbr.rel (0) target = $region9
    $region8: #{tpu_custom_call.1} parent=1 // pred_region
      %s19 = ssub.s32 3200, 3200
      %20 = vsyncadd [#allocation3], %s19
      %s21 = sshll.u32 [#allocation2], 4
      %s22 = int_to_ptr.vmem [resolvable:$true] %s21
      %27 = dma.hbm_to_vmem [thread:$0]  %s1, 3200, %s22, [#allocation3], 128, 128, 8
    $region9: #{tpu_custom_call.1} parent=1 // pred_fallthru
      _
    // Predicated region
    $region10: #{tpu_custom_call.1} parent=1 // pred_check
      _
    $region11: #{tpu_custom_call.1} parent=1 // pred_check_branch
      %29 = sbr.rel (0) target = $region13
    $region12: #{tpu_custom_call.1} parent=1 // pred_region
      _
    $region13: #{tpu_custom_call.1} parent=1 // pred_fallthru
      _
    // Predicated region
    $region14: #{tpu_custom_call.1} parent=1 // pred_check
      _
    $region15: #{tpu_custom_call.1} parent=1 // pred_check_branch
      %31 = sbr.rel (0) target = $region17
    $region16: #{tpu_custom_call.1} parent=1 // pred_region
      _
    $region17: #{tpu_custom_call.1} parent=1 // pred_fallthru
      _
    // Predicated region
    $region18: #{tpu_custom_call.1} parent=1 // pred_check
      _
    $region19: #{tpu_custom_call.1} parent=1 // pred_check_branch
      %33 = sbr.rel (0) target = $region21
    $region20: #{tpu_custom_call.1} parent=1 // pred_region
      _
    $region21: #{tpu_custom_call.1} parent=1 // pred_fallthru
      _
    // Predicated region
    $region22: #{tpu_custom_call.1} parent=1 // pred_check
      _
    $region23: #{tpu_custom_call.1} parent=1 // pred_check_branch
      %35 = sbr.rel (0) target = $region25
    $region24: #{tpu_custom_call.1} parent=1 // pred_region
      _
    $region25: #{tpu_custom_call.1} parent=1 // pred_fallthru
      _
    // Predicated region
    $region26: #{tpu_custom_call.1} parent=1 // pred_check
      _
    $region27: #{tpu_custom_call.1} parent=1 // pred_check_branch
      %37 = sbr.rel (0) target = $region29
    $region28: #{tpu_custom_call.1} parent=1 // pred_region
      _
    $region29: #{tpu_custom_call.1} parent=1 // pred_fallthru
      _
    // Predicated region
    $region30: #{tpu_custom_call.1} parent=1 // pred_check
      _
    $region31: #{tpu_custom_call.1} parent=1 // pred_check_branch
      %39 = sbr.rel (0) target = $region33
    $region32: #{tpu_custom_call.1} parent=1 // pred_region
      %40 = dma.done [#allocation3], 3200
    $region33: #{tpu_custom_call.1} parent=1 // pred_fallthru
      _
    %v41 = vld [vmem:[%s0] sm:$0xff]
    %v42 = vld [vmem:[%s0 + $0x8] sm:$0xff]
    %v43 = vld [vmem:[#allocation2] sm:$0xff]
    %v44 = vld [vmem:[#allocation2 + $0x8] sm:$0xff]
    %v45 = vld [vmem:[#allocation2 + $0x10] sm:$0xff]
    %v46 = vld [vmem:[#allocation2 + $0x18] sm:$0xff]
    %v47 = vld [vmem:[#allocation2 + $0x20] sm:$0xff]
    %v48 = vld [vmem:[#allocation2 + $0x28] sm:$0xff]
    %v49 = vld [vmem:[#allocation2 + $0x30] sm:$0xff]
    %v50 = vld [vmem:[#allocation2 + $0x38] sm:$0xff]
    %v51 = vld [vmem:[#allocation2 + $0x40] sm:$0xff]
    %v52 = vld [vmem:[#allocation2 + $0x48] sm:$0xff]
    %v53 = vld [vmem:[#allocation2 + $0x50] sm:$0xff]
    %v54 = vld [vmem:[#allocation2 + $0x58] sm:$0xff]
    %v55 = vld [vmem:[#allocation2 + $0x60] sm:$0xff]
    %v56 = vld [vmem:[#allocation2 + $0x68] sm:$0xff]
    %v57 = vld [vmem:[#allocation2 + $0x70] sm:$0xff]
    %v58 = vld [vmem:[#allocation2 + $0x78] sm:$0xff]
    %v59 = vld [vmem:[#allocation2 + $0x80] sm:$0xff]
    %v60 = vld [vmem:[#allocation2 + $0x88] sm:$0xff]
    %v61 = vld [vmem:[#allocation2 + $0x90] sm:$0xff]
    %v62 = vld [vmem:[#allocation2 + $0x98] sm:$0xff]
    %v63 = vld [vmem:[#allocation2 + $0xa0] sm:$0xff]
    %v64 = vld [vmem:[#allocation2 + $0xa8] sm:$0xff]
    %v65 = vld [vmem:[#allocation2 + $0xb0] sm:$0xff]
    %v66 = vld [vmem:[#allocation2 + $0xb8] sm:$0xff]
    %v67 = vld [vmem:[#allocation2 + $0xc0] sm:$0xff]
    %v68 = vld [vmem:[%s2] sm:$0x1]
    %v70 = vlaneseq
    %v71 = vshrl.u32 %v70, 7
    %v72 = vsub.s32 0, %v71
    %v73 = vrot.slane %v68, %v72
    %vm75 = vcmask 588800
    %v77 = vsel %vm75, %v42, 0
    %79 = vmatprep.subr.mxu0 0.0
    %80 = vmatpush1.msra.mxu0 %v58
    %81 = vmatprep.subr.mxu0 0.0
    %82 = vmatpush1.msra.mxu0 %v57
    %83 = vmatprep.subr.mxu0 0.0
    %84 = vmatpush1.msra.mxu0 %v56
    %85 = vmatprep.subr.mxu0 0.0
    %86 = vmatpush1.msra.mxu0 %v55
    %87 = vmatprep.subr.mxu0 0.0
    %88 = vmatpush1.msra.mxu0 %v54
    %89 = vmatprep.subr.mxu0 0.0
    %90 = vmatpush1.msra.mxu0 %v53
    %91 = vmatprep.subr.mxu0 0.0
    %92 = vmatpush1.msra.mxu0 %v52
    %93 = vmatprep.subr.mxu0 0.0
    %94 = vmatpush1.msra.mxu0 %v51
    %95 = vmatprep.subr.mxu0 0.0
    %96 = vmatpush1.msra.mxu0 %v50
    %97 = vmatprep.subr.mxu0 0.0
    %98 = vmatpush1.msra.mxu0 %v49
    %99 = vmatprep.subr.mxu0 0.0
    %100 = vmatpush1.msra.mxu0 %v48
    %101 = vmatprep.subr.mxu0 0.0
    %102 = vmatpush1.msra.mxu0 %v47
    %103 = vmatprep.subr.mxu0 0.0
    %104 = vmatpush1.msra.mxu0 %v46
    %105 = vmatprep.subr.mxu0 0.0
    %106 = vmatpush1.msra.mxu0 %v45
    %107 = vmatprep.subr.mxu0 0.0
    %108 = vmatpush1.msra.mxu0 %v44
    %109 = vmatprep.subr.mxu0 0.0
    %110 = vmatpush1.msra.mxu0 %v43
    %111 = vmatprep.subr.mxu0 0.0
    %112 = vmatpush2.msra.mxu0 0.0
    %113 = vmatprep.subr.mxu0 0.0
    %114 = vmatpush2.msra.mxu0 0.0
    %115 = vmatprep.subr.mxu0 0.0
    %116 = vmatpush2.msra.mxu0 0.0
    %117 = vmatprep.subr.mxu0 0.0
    %118 = vmatpush2.msra.mxu0 0.0
    %119 = vmatprep.subr.mxu0 0.0
    %120 = vmatpush2.msra.mxu0 0.0
    %121 = vmatprep.subr.mxu0 0.0
    %122 = vmatpush2.msra.mxu0 0.0
    %123 = vmatprep.subr.mxu0 0.0
    %124 = vmatpush2.msra.mxu0 0.0
    %125 = vmatprep.subr.mxu0 0.0
    %126 = vmatpush2.msra.mxu0 %v67
    %127 = vmatprep.subr.mxu0 0.0
    %128 = vmatpush2.msra.mxu0 %v66
    %129 = vmatprep.subr.mxu0 0.0
    %130 = vmatpush2.msra.mxu0 %v65
    %131 = vmatprep.subr.mxu0 0.0
    %132 = vmatpush2.msra.mxu0 %v64
    %133 = vmatprep.subr.mxu0 0.0
    %134 = vmatpush2.msra.mxu0 %v63
    %135 = vmatprep.subr.mxu0 0.0
    %136 = vmatpush2.msra.mxu0 %v62
    %137 = vmatprep.subr.mxu0 0.0
    %138 = vmatpush2.msra.mxu0 %v61
    %139 = vmatprep.subr.mxu0 0.0
    %140 = vmatpush2.msra.mxu0 %v60
    %141 = vmatprep.subr.mxu0 0.0
    %142 = vmatpush2.msra.mxu0 %v59
    %143 = vmatprep.mubr.f32.mxu0 %v77
    %144 = vmatmul.mubr.f32.gmra.mxu0 %v41
    %v145 = vpop.f32.mrf.mxu0
    %v146 = vadd.f32 %v73, %v145
    %v147 = vpop.f32.mrf.mxu0
    %148 = vdwg.mxu0
    %v149 = vmax.f32 %v146, 0.0
    %v150 = vld [vmem:[%s3] sm:$0xff]
    %v151 = vld [vmem:[%s3 + $0x8] sm:$0xff]
    %v152 = vld [vmem:[%s3 + $0x10] sm:$0xff]
    %v153 = vld [vmem:[%s3 + $0x18] sm:$0xff]
    %v154 = vld [vmem:[%s3 + $0x20] sm:$0xff]
    %v155 = vld [vmem:[%s3 + $0x28] sm:$0xff]
    %v156 = vld [vmem:[%s3 + $0x30] sm:$0xff]
    %v157 = vld [vmem:[%s3 + $0x38] sm:$0xff]
    %v158 = vld [vmem:[%s3 + $0x40] sm:$0xff]
    %v159 = vld [vmem:[%s3 + $0x48] sm:$0xff]
    %v160 = vld [vmem:[%s3 + $0x50] sm:$0xff]
    %v161 = vld [vmem:[%s3 + $0x58] sm:$0xff]
    %v162 = vld [vmem:[%s3 + $0x60] sm:$0xff]
    %v163 = vld [vmem:[%s3 + $0x68] sm:$0xff]
    %v164 = vld [vmem:[%s3 + $0x70] sm:$0xff]
    %v165 = vld [vmem:[%s3 + $0x78] sm:$0xff]
    %v166 = vld [vmem:[%s4] sm:$0x1]
    %v168 = vlaneseq
    %v169 = vshrl.u32 %v168, 7
    %v170 = vsub.s32 0, %v169
    %v171 = vrot.slane %v166, %v170
    %173 = vmatprep.subr.mxu0 0.0
    %174 = vmatpush1.msra.mxu0 %v165
    %175 = vmatprep.subr.mxu0 0.0
    %176 = vmatpush1.msra.mxu0 %v164
    %177 = vmatprep.subr.mxu0 0.0
    %178 = vmatpush1.msra.mxu0 %v163
    %179 = vmatprep.subr.mxu0 0.0
    %180 = vmatpush1.msra.mxu0 %v162
    %181 = vmatprep.subr.mxu0 0.0
    %182 = vmatpush1.msra.mxu0 %v161
    %183 = vmatprep.subr.mxu0 0.0
    %184 = vmatpush1.msra.mxu0 %v160
    %185 = vmatprep.subr.mxu0 0.0
    %186 = vmatpush1.msra.mxu0 %v159
    %187 = vmatprep.subr.mxu0 0.0
    %188 = vmatpush1.msra.mxu0 %v158
    %189 = vmatprep.subr.mxu0 0.0
    %190 = vmatpush1.msra.mxu0 %v157
    %191 = vmatprep.subr.mxu0 0.0
    %192 = vmatpush1.msra.mxu0 %v156
    %193 = vmatprep.subr.mxu0 0.0
    %194 = vmatpush1.msra.mxu0 %v155
    %195 = vmatprep.subr.mxu0 0.0
    %196 = vmatpush1.msra.mxu0 %v154
    %197 = vmatprep.subr.mxu0 0.0
    %198 = vmatpush1.msra.mxu0 %v153
    %199 = vmatprep.subr.mxu0 0.0
    %200 = vmatpush1.msra.mxu0 %v152
    %201 = vmatprep.subr.mxu0 0.0
    %202 = vmatpush1.msra.mxu0 %v151
    %203 = vmatprep.subr.mxu0 0.0
    %204 = vmatpush1.msra.mxu0 %v150
    %205 = vmatprep.subr.mxu0 0.0
    %206 = vmatpush2.msra.mxu0 0.0
    %207 = vmatprep.subr.mxu0 0.0
    %208 = vmatpush2.msra.mxu0 0.0
    %209 = vmatprep.subr.mxu0 0.0
    %210 = vmatpush2.msra.mxu0 0.0
    %211 = vmatprep.subr.mxu0 0.0
    %212 = vmatpush2.msra.mxu0 0.0
    %213 = vmatprep.subr.mxu0 0.0
    %214 = vmatpush2.msra.mxu0 0.0
    %215 = vmatprep.subr.mxu0 0.0
    %216 = vmatpush2.msra.mxu0 0.0
    %217 = vmatprep.subr.mxu0 0.0
    %218 = vmatpush2.msra.mxu0 0.0
    %219 = vmatprep.subr.mxu0 0.0
    %220 = vmatpush2.msra.mxu0 0.0
    %221 = vmatprep.subr.mxu0 0.0
    %222 = vmatpush2.msra.mxu0 0.0
    %223 = vmatprep.subr.mxu0 0.0
    %224 = vmatpush2.msra.mxu0 0.0
    %225 = vmatprep.subr.mxu0 0.0
    %226 = vmatpush2.msra.mxu0 0.0
    %227 = vmatprep.subr.mxu0 0.0
    %228 = vmatpush2.msra.mxu0 0.0
    %229 = vmatprep.subr.mxu0 0.0
    %230 = vmatpush2.msra.mxu0 0.0
    %231 = vmatprep.subr.mxu0 0.0
    %232 = vmatpush2.msra.mxu0 0.0
    %233 = vmatprep.subr.mxu0 0.0
    %234 = vmatpush2.msra.mxu0 0.0
    %235 = vmatprep.subr.mxu0 0.0
    %236 = vmatpush2.msra.mxu0 0.0
    %237 = vmatprep.mubr.f32.mxu0 0.0
    %238 = vmatmul.mubr.f32.gmra.mxu0 %v149
    %v239 = vpop.f32.mrf.mxu0
    %v240 = vadd.f32 %v171, %v239
    %v241 = vpop.f32.mrf.mxu0
    %242 = vdwg.mxu0
    %v243 = vld [vmem:[%s5] sm:$0xff]
    %v244 = vld [vmem:[%s5 + $0x8] sm:$0xff]
    %v245 = vld [vmem:[%s5 + $0x10] sm:$0xff]
    %v246 = vld [vmem:[%s5 + $0x18] sm:$0xff]
    %v247 = vld [vmem:[%s6] sm:$0x1]
    %v249 = vlaneseq
    %v250 = vshrl.u32 %v249, 7
    %v251 = vsub.s32 0, %v250
    %v252 = vrot.slane %v247, %v251
    %vm254 = vcmask 261120
    %v256 = vsel %vm254, %v240, 0
    %258 = vmatprep.subr.mxu0 0.0
    %259 = vmatpush1.msra.mxu0 0.0
    %260 = vmatprep.subr.mxu0 0.0
    %261 = vmatpush1.msra.mxu0 0.0
    %262 = vmatprep.subr.mxu0 0.0
    %263 = vmatpush1.msra.mxu0 0.0
    %264 = vmatprep.subr.mxu0 0.0
    %265 = vmatpush1.msra.mxu0 0.0
    %266 = vmatprep.subr.mxu0 0.0
    %267 = vmatpush1.msra.mxu0 0.0
    %268 = vmatprep.subr.mxu0 0.0
    %269 = vmatpush1.msra.mxu0 0.0
    %270 = vmatprep.subr.mxu0 0.0
    %271 = vmatpush1.msra.mxu0 0.0
    %272 = vmatprep.subr.mxu0 0.0
    %273 = vmatpush1.msra.mxu0 0.0
    %274 = vmatprep.subr.mxu0 0.0
    %275 = vmatpush1.msra.mxu0 0.0
    %276 = vmatprep.subr.mxu0 0.0
    %277 = vmatpush1.msra.mxu0 0.0
    %278 = vmatprep.subr.mxu0 0.0
    %279 = vmatpush1.msra.mxu0 0.0
    %280 = vmatprep.subr.mxu0 0.0
    %281 = vmatpush1.msra.mxu0 0.0
    %282 = vmatprep.subr.mxu0 0.0
    %283 = vmatpush1.msra.mxu0 %v246
    %284 = vmatprep.subr.mxu0 0.0
    %285 = vmatpush1.msra.mxu0 %v245
    %286 = vmatprep.subr.mxu0 0.0
    %287 = vmatpush1.msra.mxu0 %v244
    %288 = vmatprep.subr.mxu0 0.0
    %289 = vmatpush1.msra.mxu0 %v243
    %290 = vmatprep.subr.mxu0 0.0
    %291 = vmatpush2.msra.mxu0 0.0
    %292 = vmatprep.subr.mxu0 0.0
    %293 = vmatpush2.msra.mxu0 0.0
    %294 = vmatprep.subr.mxu0 0.0
    %295 = vmatpush2.msra.mxu0 0.0
    %296 = vmatprep.subr.mxu0 0.0
    %297 = vmatpush2.msra.mxu0 0.0
    %298 = vmatprep.subr.mxu0 0.0
    %299 = vmatpush2.msra.mxu0 0.0
    %300 = vmatprep.subr.mxu0 0.0
    %301 = vmatpush2.msra.mxu0 0.0
    %302 = vmatprep.subr.mxu0 0.0
    %303 = vmatpush2.msra.mxu0 0.0
    %304 = vmatprep.subr.mxu0 0.0
    %305 = vmatpush2.msra.mxu0 0.0
    %306 = vmatprep.subr.mxu0 0.0
    %307 = vmatpush2.msra.mxu0 0.0
    %308 = vmatprep.subr.mxu0 0.0
    %309 = vmatpush2.msra.mxu0 0.0
    %310 = vmatprep.subr.mxu0 0.0
    %311 = vmatpush2.msra.mxu0 0.0
    %312 = vmatprep.subr.mxu0 0.0
    %313 = vmatpush2.msra.mxu0 0.0
    %314 = vmatprep.subr.mxu0 0.0
    %315 = vmatpush2.msra.mxu0 0.0
    %316 = vmatprep.subr.mxu0 0.0
    %317 = vmatpush2.msra.mxu0 0.0
    %318 = vmatprep.subr.mxu0 0.0
    %319 = vmatpush2.msra.mxu0 0.0
    %320 = vmatprep.subr.mxu0 0.0
    %321 = vmatpush2.msra.mxu0 0.0
    %322 = vmatprep.mubr.f32.mxu0 0.0
    %323 = vmatmul.mubr.f32.gmra.mxu0 %v256
    %v324 = vpop.f32.mrf.mxu0
    %v325 = vadd.f32 %v252, %v324
    %v326 = vpop.f32.mrf.mxu0
    %327 = vdwg.mxu0
    %328 = vst [vmem:[#allocation5] sm:$0xff] %v325
    // Predicated region
    $region34: #{tpu_custom_call.1} parent=1 // pred_check
      _
    $region35: #{tpu_custom_call.1} parent=1 // pred_check_branch
      %330 = sbr.rel (0) target = $region37
    $region36: #{tpu_custom_call.1} parent=1 // pred_region
      %s332 = ssub.s32 128, 128
      %333 = vsyncadd [#allocation4], %s332
      %s335 = sshll.u32 [#allocation5], 4
      %s336 = int_to_ptr.vmem [resolvable:$true] %s335
      %338 = dma.vmem_to_hbm [thread:$0]  %s336, 128, %s7, [#allocation4]
    $region37: #{tpu_custom_call.1} parent=1 // pred_fallthru
      _
    // Predicated region
    $region38: #{tpu_custom_call.1} parent=1 // pred_check
      _
    $region39: #{tpu_custom_call.1} parent=1 // pred_check_branch
      %340 = sbr.rel (0) target = $region41
    $region40: #{tpu_custom_call.1} parent=1 // pred_region
      %341 = dma.done [#allocation4], 128
    $region41: #{tpu_custom_call.1} parent=1 // pred_fallthru
      _
    %342 = vsyncpa [#allocation3], 1
    %343 = vsyncpa [#allocation4], 1

</llo_original>
